<compile_context>
chip_gen: v7x
topology: tpu7x:2x2x1
jax: 0.10.0
libtpu: 0.0.40
codegen_flags: <defaults>
</compile_context>

<pallas_src>
import functools

import jax
import jax.numpy as jnp
from jax import lax
from jax.experimental import pallas as pl
from jax.experimental.pallas import tpu as pltpu


def _round_up(x, m):
    return ((x + m - 1) // m) * m


def _pick_tile(size, cap, quantum):
    """Tile size for a lane / contraction dim.

    Full extent if it fits under `cap` (no padding at all), otherwise the
    largest multiple of `quantum` <= cap that divides round_up(size, quantum)
    (minimizes zero padding, e.g. K=768 -> 384 instead of padding to 1024)."""
    if size <= cap:
        return size
    padded = _round_up(size, quantum)
    best = quantum
    t = quantum
    while t <= cap:
        if padded % t == 0:
            best = t
        t += quantum
    return best


# --------------------------------------------------------------------------
# Tiled matmul kernels:  y = x @ w (+ b)
# --------------------------------------------------------------------------
def _matmul_kernel(x_ref, w_ref, o_ref, acc_ref):
    @pl.when(pl.program_id(2) == 0)
    def _():
        acc_ref[...] = jnp.zeros_like(acc_ref)

    acc_ref[...] += jnp.dot(x_ref[...], w_ref[...],
                            preferred_element_type=jnp.float32)

    @pl.when(pl.program_id(2) == pl.num_programs(2) - 1)
    def _():
        o_ref[...] = acc_ref[...].astype(o_ref.dtype)


def _matmul_bias_kernel(x_ref, w_ref, b_ref, o_ref, acc_ref):
    @pl.when(pl.program_id(2) == 0)
    def _():
        acc_ref[...] = jnp.zeros_like(acc_ref)

    acc_ref[...] += jnp.dot(x_ref[...], w_ref[...],
                            preferred_element_type=jnp.float32)

    @pl.when(pl.program_id(2) == pl.num_programs(2) - 1)
    def _():
        o_ref[...] = (acc_ref[...] + b_ref[...].astype(jnp.float32)).astype(o_ref.dtype)


def pallas_linear(x, w, b=None, *, tm=512, tn=256, tk=512,
                  out_dtype=None, mxu_dtype=None):
    """y = x @ w (+ b).  x: (M, K), w: (K, N) (already K-major), b: (N,) or None."""
    M, K = x.shape
    K2, N = w.shape
    assert K == K2
    out_dtype = x.dtype if out_dtype is None else out_dtype

    if mxu_dtype is not None:
        x = x.astype(mxu_dtype)
        w = w.astype(mxu_dtype)

    sub = 8 if jnp.dtype(x.dtype).itemsize == 4 else 16
    tm = max(sub, (tm // sub) * sub)
    if M <= tm:
        tm = M                              # full-extent rows, no row padding
    tk = _pick_tile(K, tk, 128)
    tn = _pick_tile(N, tn, 128)
    Mp, Kp, Np = _round_up(M, tm), _round_up(K, tk), _round_up(N, tn)

    if (Mp, Kp) != (M, K):
        x = jnp.pad(x, ((0, Mp - M), (0, Kp - K)))
    if (Kp, Np) != (K, N):
        w = jnp.pad(w, ((0, Kp - K), (0, Np - N)))

    grid = (Mp // tm, Np // tn, Kp // tk)

    in_specs = [
        pl.BlockSpec((tm, tk), lambda i, j, k: (i, k)),
        pl.BlockSpec((tk, tn), lambda i, j, k: (k, j)),
    ]
    inputs = [x, w]
    if b is not None:
        bp = b.reshape(1, N).astype(jnp.float32)
        if Np != N:
            bp = jnp.pad(bp, ((0, 0), (0, Np - N)))
        in_specs.append(pl.BlockSpec((1, tn), lambda i, j, k: (0, j)))
        inputs.append(bp)
        kernel = _matmul_bias_kernel
    else:
        kernel = _matmul_kernel

    in_bytes = jnp.dtype(x.dtype).itemsize
    out_bytes = jnp.dtype(out_dtype).itemsize
    cost = pl.CostEstimate(
        flops=2 * Mp * Np * Kp,
        transcendentals=0,
        bytes_accessed=(Mp * Kp + Kp * Np) * in_bytes + Mp * Np * out_bytes,
    )

    out = pl.pallas_call(
        kernel,
        out_shape=jax.ShapeDtypeStruct((Mp, Np), out_dtype),
        grid=grid,
        in_specs=in_specs,
        out_specs=pl.BlockSpec((tm, tn), lambda i, j, k: (i, j)),
        scratch_shapes=[pltpu.VMEM((tm, tn), jnp.float32)],
        compiler_params=pltpu.CompilerParams(
            dimension_semantics=("parallel", "parallel", "arbitrary")),
        cost_estimate=cost,
    )(*inputs)

    if (Mp, Np) != (M, N):
        out = out[:M, :N]
    return out


# --------------------------------------------------------------------------
# Flash-style attention kernel
#   q: (B, H, N, D), k/v: (B, H, Mp, D) -> out: (B, N, H*D)  (heads merged)
#   grid = (B, Np//tq, Mp//tkv); online softmax stats kept in f32 VMEM scratch.
# --------------------------------------------------------------------------
def _flash_attn_kernel(*refs, seq_k, tkv, mask_mode, recip_approx):
    # mask_mode: 0 = no mask, 1 = KV-padding only (masked in-kernel, last tile
    # only), 2 = user mask input (padded keys zeroed out in the mask itself).
    if mask_mode == 2:
        mask_ref, q_ref, k_ref, v_ref, o_ref, m_sc, l_sc, acc_sc = refs
    else:
        q_ref, k_ref, v_ref, o_ref, m_sc, l_sc, acc_sc = refs
        mask_ref = None

    kv = pl.program_id(2)
    last_kv = pl.num_programs(2) - 1

    @pl.when(kv == 0)
    def _():
        m_sc[...] = jnp.full_like(m_sc, -jnp.inf)
        l_sc[...] = jnp.zeros_like(l_sc)
        acc_sc[...] = jnp.zeros_like(acc_sc)

    # softmax scale is already folded into the q projection weights.
    q = q_ref[0]                       # (H, tq, D)
    k = k_ref[0]                       # (H, tkv, D)
    v = v_ref[0]                       # (H, tkv, D)

    # contract over the head feature dim; no explicit k.T materialized.
    s = jnp.einsum('hqd,hkd->hqk', q, k,
                   preferred_element_type=jnp.float32)        # (H, tq, tkv) f32

    # finfo.min (== -finfo.max, matching the PyTorch reference).  If an entire
    # early KV tile is masked, p is momentarily 1 there, but it is zeroed later
    # via alpha=exp(finfo.min - m_new)=0 once a valid key appears.
    neg = jnp.finfo(jnp.float32).min

    def update(s_val):
        m_prev = m_sc[...]                                    # (H, tq, 1)
        m_new = jnp.maximum(m_prev, jnp.max(s_val, axis=-1, keepdims=True))
        alpha = jnp.exp(m_prev - m_new)
        p = jnp.exp(s_val - m_new)
        l_sc[...] = alpha * l_sc[...] + jnp.sum(p, axis=-1, keepdims=True)
        acc_sc[...] = alpha * acc_sc[...] + jnp.einsum(
            'hqk,hkd->hqd', p.astype(v.dtype), v,
            preferred_element_type=jnp.float32)
        m_sc[...] = m_new

    if mask_mode == 2:
        valid = (mask_ref[0] > 0)[None]                       # (1, 1, tkv)
        update(jnp.where(valid, s, neg))
    elif mask_mode == 1:
        # Padded keys live exclusively in the last kv tile, so the (H,tq,tkv)
        # select is only paid there; all other tiles take the unmasked path.
        col = kv * tkv + lax.broadcasted_iota(jnp.int32, (1, 1, tkv), 2)

        @pl.when(kv == last_kv)
        def _():
            update(jnp.where(col < seq_k, s, neg))

        @pl.when(kv != last_kv)
        def _():
            update(s)
    else:
        update(s)

    @pl.when(kv == last_kv)
    def _():
        inv = pl.reciprocal(l_sc[...], approx=recip_approx)   # EUP
        o = acc_sc[...] * inv                                 # (H, tq, D) f32
        # Lane-dense relayout (H, tq, D) -> (tq, H*D): explicit per-head lane
        # placement, single wide store per (b, q-tile).
        o_dense = jnp.concatenate([o[h] for h in range(o.shape[0])], axis=-1)
        o_ref[0] = o_dense.astype(o_ref.dtype)


def pallas_flash_attention(q, k, v, mask=None, *, tq=256, tkv=256, out_dtype=None):
    """q: (B,H,N,D); k,v: (B,H,M,D); mask: (B,M) bool/int (True=keep) or None.
    Returns (B, N, H*D) with heads already merged (lane-dense)."""
    B, H, N, D = q.shape
    _, _, M, _ = k.shape
    out_dtype = q.dtype if out_dtype is None else out_dtype

    # ---- query tiling (bounds VMEM; second parallel axis for megacore) ----
    if N <= tq:
        tq = N
        Np = N
    else:
        tq = max(8, (tq // 8) * 8)
        Np = _round_up(N, tq)
        if Np != N:
            q = jnp.pad(q, ((0, 0), (0, 0), (0, Np - N), (0, 0)))
    num_q = Np // tq

    # ---- kv tiling ----
    if M <= tkv:
        tkv = M
        Mp = M
    else:
        tkv = max(8, (tkv // 8) * 8)
        Mp = _round_up(M, tkv)
    num_kv = Mp // tkv
    if Mp != M:
        k = jnp.pad(k, ((0, 0), (0, 0), (0, Mp - M), (0, 0)))
        v = jnp.pad(v, ((0, 0), (0, 0), (0, Mp - M), (0, 0)))

    if mask is not None:
        mask_mode = 2
    elif Mp != M:
        mask_mode = 1
    else:
        mask_mode = 0

    inputs, in_specs = [], []
    if mask_mode == 2:
        m2 = mask.astype(jnp.int32)
        if Mp != M:
            m2 = jnp.pad(m2, ((0, 0), (0, Mp - M)))           # padded keys -> invalid
        m2 = m2.reshape(B, 1, Mp)
        inputs.append(m2)
        in_specs.append(pl.BlockSpec((1, 1, tkv), lambda b, qi, kj: (b, 0, kj)))

    inputs += [q, k, v]
    in_specs += [
        pl.BlockSpec((1, H, tq, D), lambda b, qi, kj: (b, 0, qi, 0)),
        pl.BlockSpec((1, H, tkv, D), lambda b, qi, kj: (b, 0, kj, 0)),
        pl.BlockSpec((1, H, tkv, D), lambda b, qi, kj: (b, 0, kj, 0)),
    ]

    recip_approx = bool(jnp.dtype(out_dtype) != jnp.dtype(jnp.float32))
    kernel = functools.partial(_flash_attn_kernel, seq_k=M, tkv=tkv,
                               mask_mode=mask_mode, recip_approx=recip_approx)

    qb = jnp.dtype(q.dtype).itemsize
    ob = jnp.dtype(out_dtype).itemsize
    cost = pl.CostEstimate(
        flops=4 * B * H * Np * Mp * D,
        transcendentals=B * H * Np * (Mp + num_kv),
        bytes_accessed=(q.size + num_q * (k.size + v.size)) * qb
                       + B * Np * H * D * ob,
    )

    # Explicit VMEM budget when the working set is large (v7x: 64 MiB physical,
    # 32 MiB scoped default; v5e: 16 MiB scoped default).
    fp = (2 * H * tq * D * qb                 # q block (double buffered)
          + 2 * 2 * H * tkv * D * qb          # k + v blocks (double buffered)
          + 2 * tq * H * D * ob               # out block (double buffered)
          + 2 * H * tq * 4 + H * tq * D * 4   # stats + accumulator scratch
          + 2 * H * tq * tkv * 4)             # s / p temporaries
    cparams = dict(dimension_semantics=("parallel", "parallel", "arbitrary"))
    if fp > 24 * (1 << 20):
        cparams["vmem_limit_bytes"] = int(min(max(48 << 20, int(1.25 * fp)), 100 << 20))

    out = pl.pallas_call(
        kernel,
        out_shape=jax.ShapeDtypeStruct((B, Np, H * D), out_dtype),
        grid=(B, num_q, num_kv),
        in_specs=in_specs,
        out_specs=pl.BlockSpec((1, tq, H * D), lambda b, qi, kj: (b, qi, 0)),
        scratch_shapes=[
            pltpu.VMEM((H, tq, 1), jnp.float32),   # running max
            pltpu.VMEM((H, tq, 1), jnp.float32),   # running sum
            pltpu.VMEM((H, tq, D), jnp.float32),   # per-head output accumulator
        ],
        compiler_params=pltpu.CompilerParams(**cparams),
        cost_estimate=cost,
    )(*inputs)

    if Np != N:
        out = out[:, :N, :]
    return out


# --------------------------------------------------------------------------
# Module: Attention (Perceiver-IO)
# --------------------------------------------------------------------------
class AttentionParams:
    def __init__(self, key, query_dim, context_dim=None, heads=8, dim_head=64,
                 dtype=jnp.float32):
        context_dim = query_dim if context_dim is None else context_dim
        inner_dim = dim_head * heads
        self.heads = heads
        self.dim_head = dim_head
        self.scale = dim_head ** (-0.5)
        k1, k2, k3, k4 = jax.random.split(key, 4)
        # PyTorch nn.Linear stores weight as (out_features, in_features).
        self.w_q = jax.random.normal(k1, (inner_dim, query_dim), dtype) * 0.02
        self.w_kv = jax.random.normal(k2, (inner_dim * 2, context_dim), dtype) * 0.02
        self.w_out = jax.random.normal(k3, (query_dim, inner_dim), dtype) * 0.02
        self.b_out = jax.random.normal(k4, (query_dim,), dtype) * 0.02

        # --- hoisted, kernel-ready weights (done once, not per forward) ---
        # softmax scale folded into the q projection; all weights pre-transposed
        # to (K, N) layout so no .T / concat / pad relayouts happen per call.
        wq_scaled = self.w_q * self.scale
        self.wq_t = jnp.asarray(wq_scaled.T)            # (query_dim, inner)
        self.wkv_t = jnp.asarray(self.w_kv.T)           # (context_dim, 2*inner)
        self.wout_t = jnp.asarray(self.w_out.T)         # (inner, query_dim)
        if context_dim == query_dim:
            self.wqkv_t = jnp.asarray(
                jnp.concatenate([wq_scaled, self.w_kv], axis=0).T)  # (query_dim, 3*inner)
        else:
            self.wqkv_t = None


def attention_forward(params: AttentionParams, x, context=None, mask=None,
                      mxu_dtype=None, attn_tq=256, attn_tkv=256):
    """x: (B, N, query_dim); context: (B, M, context_dim) or None;
    mask: optional boolean (B, ...) key mask (True = attend);
    mxu_dtype: e.g. jnp.bfloat16 to run the MXU paths in bf16 (f32 stats)."""
    h, d = params.heads, params.dim_head
    B, N, Dq = x.shape
    ctx = x if context is None else context
    _, M, Dc = ctx.shape
    inner = h * d
    proj_dtype = x.dtype if mxu_dtype is None else mxu_dtype

    x2 = x.reshape(B * N, Dq)

    # --- projections (tiled Pallas matmuls); scale pre-folded into w_q ---
    if context is None and params.wqkv_t is not None:
        # Self-attention: fused q/kv projection -> x read from HBM once.
        qkv = pallas_linear(x2, params.wqkv_t, mxu_dtype=mxu_dtype,
                            out_dtype=proj_dtype)
        q = qkv[:, :inner].reshape(B, N, inner)
        kvp = qkv[:, inner:].reshape(B, M, 2 * inner)
    else:
        q = pallas_linear(x2, params.wq_t, mxu_dtype=mxu_dtype,
                          out_dtype=proj_dtype).reshape(B, N, inner)
        kvp = pallas_linear(ctx.reshape(B * M, Dc), params.wkv_t,
                            mxu_dtype=mxu_dtype,
                            out_dtype=proj_dtype).reshape(B, M, 2 * inner)
    k, v = kvp[..., :inner], kvp[..., inner:]

    # rearrange 'b n (h d) -> b h n d'
    # TODO(synk): fuse this head split into the projection out_specs (4-D out
    # shape with a (head, d) column index_map) to drop these bandwidth-only ops.
    def split_heads(t, seq):
        return t.reshape(B, seq, h, d).transpose(0, 2, 1, 3)

    qh, kh, vh = split_heads(q, N), split_heads(k, M), split_heads(v, M)

    mask2 = None if mask is None else mask.reshape(B, -1)     # 'b ... -> b (...)'

    # --- flash attention core: returns heads-merged (B, N, inner) directly ---
    out = pallas_flash_attention(qh, kh, vh, mask2, tq=attn_tq, tkv=attn_tkv,
                                 out_dtype=x.dtype)

    # --- output projection with bias (tiled Pallas matmul) ---
    y = pallas_linear(out.reshape(B * N, inner), params.wout_t, params.b_out,
                      mxu_dtype=mxu_dtype, out_dtype=x.dtype)
    return y.reshape(B, N, Dq)


# --------------------------------------------------------------------------
# Pure-JAX reference for sanity checking
# --------------------------------------------------------------------------
def attention_reference(params: AttentionParams, x, context=None, mask=None):
    h, d = params.heads, params.dim_head
    B, N, Dq = x.shape
    ctx = x if context is None else context
    _, M, _ = ctx.shape
    inner = h * d
    q = x @ params.w_q.T
    kv = ctx @ params.w_kv.T
    k, v = kv[..., :inner], kv[..., inner:]

    def sh(t, s):
        return t.reshape(B, s, h, d).transpose(0, 2, 1, 3).reshape(B * h, s, d)

    q, k, v = sh(q, N), sh(k, M), sh(v, M)
    sim = jnp.einsum('bid,bjd->bij', q, k) * params.scale
    if mask is not None:
        m = mask.reshape(B, 1, 1, M)
        m = jnp.broadcast_to(m, (B, h, 1, M)).reshape(B * h, 1, M)
        sim = jnp.where(m, sim, jnp.finfo(sim.dtype).min)
    attn = jax.nn.softmax(sim, axis=-1)
    out = jnp.einsum('bij,bjd->bid', attn, v)
    out = out.reshape(B, h, N, d).transpose(0, 2, 1, 3).reshape(B, N, inner)
    return out @ params.w_out.T + params.b_out


if __name__ == "__main__":
    key = jax.random.PRNGKey(0)
    kp, kx, kc, km, kx5, kc5, km5 = jax.random.split(key, 7)

    B, N, M = 2, 8, 16
    query_dim, context_dim = 32, 32
    heads, dim_head = 4, 16

    params = AttentionParams(kp, query_dim, context_dim, heads, dim_head)
    x = jax.random.normal(kx, (B, N, query_dim), jnp.float32)
    context = jax.random.normal(kc, (B, M, context_dim), jnp.float32)

    # 1) cross-attention, f32
    y = jax.block_until_ready(attention_forward(params, x, context))
    y_ref = attention_reference(params, x, context)
    assert y.shape == (B, N, query_dim)
    assert jnp.allclose(y, y_ref, atol=2e-3, rtol=2e-3), "cross-attn mismatch"

    # 2) self-attention (fused qkv projection), f32
    y_s = jax.block_until_ready(attention_forward(params, x))
    y_s_ref = attention_reference(params, x)
    assert jnp.allclose(y_s, y_s_ref, atol=2e-3, rtol=2e-3), "self-attn mismatch"

    # 3) cross-attention with a boolean key mask
    mask = jax.random.bernoulli(km, 0.7, (B, M)).at[:, 0].set(True)
    y_m = jax.block_until_ready(attention_forward(params, x, context, mask=mask))
    y_m_ref = attention_reference(params, x, context, mask=mask)
    assert jnp.allclose(y_m, y_m_ref, atol=2e-3, rtol=2e-3), "masked attn mismatch"

    # 4) bf16 MXU path (f32 accumulation / softmax stats)
    y_b = jax.block_until_ready(
        attention_forward(params, x, context, mxu_dtype=jnp.bfloat16))
    assert jnp.allclose(y_b, y_ref, atol=5e-2, rtol=5e-2), "bf16 path mismatch"

    # 5) tiled path: multiple q and kv tiles + KV padding (last-tile pad mask)
    N5, M5 = 20, 40
    x5 = jax.random.normal(kx5, (B, N5, query_dim), jnp.float32)
    c5 = jax.random.normal(kc5, (B, M5, context_dim), jnp.float32)
    y5 = jax.block_until_ready(
        attention_forward(params, x5, c5, attn_tq=8, attn_tkv=16))
    y5_ref = attention_reference(params, x5, c5)
    assert jnp.allclose(y5, y5_ref, atol=2e-3, rtol=2e-3), "tiled cross-attn mismatch"

    # 6) tiled path with a user mask (multi-tile online softmax + masked padding)
    mask5 = jax.random.bernoulli(km5, 0.7, (B, M5)).at[:, 0].set(True)
    y6 = jax.block_until_ready(
        attention_forward(params, x5, c5, mask=mask5, attn_tq=8, attn_tkv=16))
    y6_ref = attention_reference(params, x5, c5, mask=mask5)
    assert jnp.allclose(y6, y6_ref, atol=2e-3, rtol=2e-3), "tiled masked attn mismatch"

    print("KERNEL_OK")
</pallas_src>

<mosaic_0001>
module attributes {stable_mosaic.version = 11 : i64} {
  func.func @_matmul_kernel(%arg0: i32, %arg1: i32, %arg2: i32, %arg3: memref<16x32xf32, #tpu.memory_space<vmem>>, %arg4: memref<32x64xf32, #tpu.memory_space<vmem>>, %arg5: memref<16x64xf32, #tpu.memory_space<vmem>>, %arg6: memref<16x64xf32, #tpu.memory_space<vmem>>) attributes {dimension_semantics = [#tpu.dimension_semantics<parallel>, #tpu.dimension_semantics<parallel>, #tpu.dimension_semantics<arbitrary>], iteration_bounds = array<i64: 1, 1, 1>, scalar_prefetch = 0 : i64, scratch_operands = 1 : i64, tpu.core_type = #tpu.core_type<tc>, window_params = [{transform_indices = @transform_0, window_bounds = array<i64: 16, 32>}, {transform_indices = @transform_1, window_bounds = array<i64: 32, 64>}, {transform_indices = @transform_2, window_bounds = array<i64: 16, 64>}]} {
    %c0_i32 = arith.constant 0 : i32
    %0 = arith.cmpi eq, %arg2, %c0_i32 : i32
    %1 = arith.extui %0 : i1 to i32
    %c0_i32_0 = arith.constant 0 : i32
    %2 = arith.cmpi ne, %1, %c0_i32_0 : i32
    scf.if %2 {
      %cst_10 = arith.constant 0.000000e+00 : f32
      %12 = vector.broadcast %cst_10 : f32 to vector<16x64xf32>
      %c0_11 = arith.constant 0 : index
      %c0_12 = arith.constant 0 : index
      %13 = vector.load %arg6[%c0_11, %c0_12] : memref<16x64xf32, #tpu.memory_space<vmem>>, vector<16x64xf32>
      tpu.vector_store %arg6[%c0_11, %c0_12], %12 {strides = array<i32>} : memref<16x64xf32, #tpu.memory_space<vmem>>, vector<16x64xf32>,
    } else {
    }
    %c0 = arith.constant 0 : index
    %c0_1 = arith.constant 0 : index
    %3 = vector.load %arg6[%c0, %c0_1] : memref<16x64xf32, #tpu.memory_space<vmem>>, vector<16x64xf32>
    %c0_2 = arith.constant 0 : index
    %c0_3 = arith.constant 0 : index
    %4 = vector.load %arg3[%c0_2, %c0_3] : memref<16x32xf32, #tpu.memory_space<vmem>>, vector<16x32xf32>
    %c0_4 = arith.constant 0 : index
    %c0_5 = arith.constant 0 : index
    %5 = vector.load %arg4[%c0_4, %c0_5] : memref<32x64xf32, #tpu.memory_space<vmem>>, vector<32x64xf32>
    %cst = arith.constant dense<0.000000e+00> : vector<16x64xf32>
    %6 = tpu.matmul %4, %5, %cst {dimension_numbers = #tpu.dot_dimension_numbers<[1], [0], [0], [1], [0, 0, 1, 1], [], []>} : vector<16x32xf32>, vector<32x64xf32>, vector<16x64xf32> -> vector<16x64xf32>
    %7 = arith.addf %3, %6 : vector<16x64xf32>
    %c0_6 = arith.constant 0 : index
    %c0_7 = arith.constant 0 : index
    %8 = vector.load %arg6[%c0_6, %c0_7] : memref<16x64xf32, #tpu.memory_space<vmem>>, vector<16x64xf32>
    tpu.vector_store %arg6[%c0_6, %c0_7], %7 {strides = array<i32>} : memref<16x64xf32, #tpu.memory_space<vmem>>, vector<16x64xf32>,
    %c0_i32_8 = arith.constant 0 : i32
    %9 = arith.cmpi eq, %arg2, %c0_i32_8 : i32
    %10 = arith.extui %9 : i1 to i32
    %c0_i32_9 = arith.constant 0 : i32
    %11 = arith.cmpi ne, %10, %c0_i32_9 : i32
    scf.if %11 {
      %c0_10 = arith.constant 0 : index
      %c0_11 = arith.constant 0 : index
      %12 = vector.load %arg6[%c0_10, %c0_11] : memref<16x64xf32, #tpu.memory_space<vmem>>, vector<16x64xf32>
      %c0_12 = arith.constant 0 : index
      %c0_13 = arith.constant 0 : index
      %13 = vector.load %arg5[%c0_12, %c0_13] : memref<16x64xf32, #tpu.memory_space<vmem>>, vector<16x64xf32>
      tpu.vector_store %arg5[%c0_12, %c0_13], %12 {strides = array<i32>} : memref<16x64xf32, #tpu.memory_space<vmem>>, vector<16x64xf32>,
    } else {
    }
    return
  }
  func.func @transform_0(%arg0: i32, %arg1: i32, %arg2: i32) -> (i32, i32) {
    %c0_i32 = arith.constant 0 : i32
    return %arg0, %arg2 : i32, i32
  }
  func.func @transform_1(%arg0: i32, %arg1: i32, %arg2: i32) -> (i32, i32) {
    %c0_i32 = arith.constant 0 : i32
    return %arg2, %arg1 : i32, i32
  }
  func.func @transform_2(%arg0: i32, %arg1: i32, %arg2: i32) -> (i32, i32) {
    %c0_i32 = arith.constant 0 : i32
    return %arg0, %arg1 : i32, i32
  }
}

</mosaic_0001>

<llo_original>
// kernel: tpu_custom_call.1
$region0: #{tpu_custom_call.1}
  #allocation0 [shape = 'u32[]', space=smem, size = 0x4, offset = 0x4, fixed_abs, tag = 'smem constant byte address 0x4 - core index']
  #allocation1 [shape = 'u32[144,128]{1,0:T(1,128)}', space=vmem, size = 0x12000, scoped, tag = 'internal scratch']
  #allocation2 [shape = 'f32[16,64]{1,0:T(8,128)}', space=vmem, size = 0x2000, scoped, tag = 'scratch operand']
  %s0 = inlined_call_operand.hbm [shape: f32[16,32], index: 0, kind: input, shape index: {}]
  %s1 = inlined_call_operand.hbm [shape: f32[32,64], index: 1, kind: input, shape index: {}]
  %s2 = inlined_call_operand.hbm [shape: f32[16,64], index: 2, kind: output, shape index: {}]
  %s3 = sld [smem:[#allocation0]]
  $region34: #{tpu_custom_call.1} parent=0
    _
  %s5 = ssub.s32 1, %s3
  %s6 = scalar_select 0, %s5, %s3
  $region1: #{tpu_custom_call.1} parent=0
    #allocation3 [shape = 'u8[8192]{0}', space=vmem, size = 0x2000, scoped, tag = 'input window, operand 0, single buffered']
    #allocation4 [shape = 's32[1]{0}', space=sflag, size = 0x4, scoped, tag = 'scoped memory for tpu_custom_call.1']
    #allocation5 [shape = 's32[1]{0}', space=sflag, size = 0x4, scoped, tag = 'scoped memory for tpu_custom_call.1']
    #allocation6 [shape = 'u8[16384]{0}', space=vmem, size = 0x4000, scoped, tag = 'input window, operand 1, single buffered']
    #allocation7 [shape = 's32[1]{0}', space=sflag, size = 0x4, scoped, tag = 'scoped memory for tpu_custom_call.1']
    #allocation8 [shape = 'u8[8192]{0}', space=vmem, size = 0x2000, scoped, tag = 'output window, operand 0, single buffered']
    %7 = vsyncpa [#allocation4], 0
    %8 = vsyncpa [#allocation7], 0
    %9 = vsyncpa [#allocation5], 0
    // Predicated region
    $region2: #{tpu_custom_call.1} parent=1 // pred_check
      _
    $region3: #{tpu_custom_call.1} parent=1 // pred_check_branch
      %11 = sbr.rel (0) target = $region5
    $region4: #{tpu_custom_call.1} parent=1 // pred_region
      %s13 = ssub.s32 256, 256
      %14 = vsyncadd [#allocation4], %s13
      %s15 = sshll.u32 [#allocation3], 4
      %s16 = int_to_ptr.vmem [resolvable:$true] %s15
      %21 = dma.hbm_to_vmem [thread:$0]  %s0, 256, %s16, [#allocation4], 128, 128, 8
    $region5: #{tpu_custom_call.1} parent=1 // pred_fallthru
      _
    // Predicated region
    $region6: #{tpu_custom_call.1} parent=1 // pred_check
      _
    $region7: #{tpu_custom_call.1} parent=1 // pred_check_branch
      %23 = sbr.rel (0) target = $region9
    $region8: #{tpu_custom_call.1} parent=1 // pred_region
      %s25 = ssub.s32 512, 512
      %26 = vsyncadd [#allocation7], %s25
      %s27 = sshll.u32 [#allocation6], 4
      %s28 = int_to_ptr.vmem [resolvable:$true] %s27
      %33 = dma.hbm_to_vmem [thread:$0]  %s1, 512, %s28, [#allocation7], 128, 128, 8
    $region9: #{tpu_custom_call.1} parent=1 // pred_fallthru
      _
    // Predicated region
    $region10: #{tpu_custom_call.1} parent=1 // pred_check
      _
    $region11: #{tpu_custom_call.1} parent=1 // pred_check_branch
      %35 = sbr.rel (0) target = $region13
    $region12: #{tpu_custom_call.1} parent=1 // pred_region
      %36 = dma.done [#allocation4], 256
    $region13: #{tpu_custom_call.1} parent=1 // pred_fallthru
      _
    // Predicated region
    $region14: #{tpu_custom_call.1} parent=1 // pred_check
      _
    $region15: #{tpu_custom_call.1} parent=1 // pred_check_branch
      %38 = sbr.rel (0) target = $region17
    $region16: #{tpu_custom_call.1} parent=1 // pred_region
      %39 = dma.done [#allocation7], 512
    $region17: #{tpu_custom_call.1} parent=1 // pred_fallthru
      _
    %p40 = scmp.eq.s32.totalorder 0, 0
    // Predicated region
    $region18: #{tpu_custom_call.1} parent=1 // pred_check
      %p41 = pneg %p40
    $region19: #{tpu_custom_call.1} parent=1 // pred_check_branch
      %43 = sbr.rel (%p41) target = $region21
    $region20: #{tpu_custom_call.1} parent=1 // pred_region
      %vm44 = vcmask 523264
      %45 = vst.msk [vmem:[#allocation2] sm:$0xff] %vm44, 0.0
      %46 = vst.msk [vmem:[#allocation2 + $0x8] sm:$0xff] %vm44, 0.0
    $region21: #{tpu_custom_call.1} parent=1 // pred_fallthru
      _
    %v47 = vld [vmem:[#allocation2] sm:$0xff]
    %v48 = vld [vmem:[#allocation2 + $0x8] sm:$0xff]
    %v49 = vld [vmem:[#allocation3] sm:$0xff]
    %v50 = vld [vmem:[#allocation3 + $0x8] sm:$0xff]
    %v51 = vld [vmem:[#allocation6] sm:$0xff]
    %v52 = vld [vmem:[#allocation6 + $0x8] sm:$0xff]
    %v53 = vld [vmem:[#allocation6 + $0x10] sm:$0xff]
    %v54 = vld [vmem:[#allocation6 + $0x18] sm:$0xff]
    %vm55 = vcmask 261120
    %v57 = vsel %vm55, %v49, 0
    %v60 = vsel %vm55, %v50, 0
    %62 = vmatprep.subr.mxu0 0.0
    %63 = vmatpush1.msra.mxu0 %v51
    %64 = vmatprep.subr.mxu0 0.0
    %65 = vmatpush1.msra.mxu0 %v52
    %66 = vmatprep.subr.mxu0 0.0
    %67 = vmatpush1.msra.mxu0 %v53
    %68 = vmatprep.subr.mxu0 0.0
    %69 = vmatpush1.msra.mxu0 %v54
    %70 = vmatprep.subr.mxu0 0.0
    %71 = vmatpush1.msra.mxu0 0.0
    %72 = vmatprep.subr.mxu0 0.0
    %73 = vmatpush1.msra.mxu0 0.0
    %74 = vmatprep.subr.mxu0 0.0
    %75 = vmatpush1.msra.mxu0 0.0
    %76 = vmatprep.subr.mxu0 0.0
    %77 = vmatpush1.msra.mxu0 0.0
    %78 = vmatprep.subr.mxu0 0.0
    %79 = vmatpush1.msra.mxu0 0.0
    %80 = vmatprep.subr.mxu0 0.0
    %81 = vmatpush1.msra.mxu0 0.0
    %82 = vmatprep.subr.mxu0 0.0
    %83 = vmatpush1.msra.mxu0 0.0
    %84 = vmatprep.subr.mxu0 0.0
    %85 = vmatpush1.msra.mxu0 0.0
    %86 = vmatprep.subr.mxu0 0.0
    %87 = vmatpush1.msra.mxu0 0.0
    %88 = vmatprep.subr.mxu0 0.0
    %89 = vmatpush1.msra.mxu0 0.0
    %90 = vmatprep.subr.mxu0 0.0
    %91 = vmatpush1.msra.mxu0 0.0
    %92 = vmatprep.subr.mxu0 0.0
    %93 = vmatpush1.msra.mxu0 0.0
    %94 = vmatprep.subr.mxu0 0.0
    %95 = vmatpush1.msra.mxu0 0.0
    %96 = vmatprep.subr.mxu0 0.0
    %97 = vmatpush1.msra.mxu0 0.0
    %98 = vmatprep.subr.mxu0 0.0
    %99 = vmatpush1.msra.mxu0 0.0
    %100 = vmatprep.subr.mxu0 0.0
    %101 = vmatpush1.msra.mxu0 0.0
    %102 = vmatprep.subr.mxu0 0.0
    %103 = vmatpush1.msra.mxu0 0.0
    %104 = vmatprep.subr.mxu0 0.0
    %105 = vmatpush1.msra.mxu0 0.0
    %106 = vmatprep.subr.mxu0 0.0
    %107 = vmatpush1.msra.mxu0 0.0
    %108 = vmatprep.subr.mxu0 0.0
    %109 = vmatpush1.msra.mxu0 0.0
    %110 = vmatprep.subr.mxu0 0.0
    %111 = vmatpush1.msra.mxu0 0.0
    %112 = vmatprep.subr.mxu0 0.0
    %113 = vmatpush1.msra.mxu0 0.0
    %114 = vmatprep.subr.mxu0 0.0
    %115 = vmatpush1.msra.mxu0 0.0
    %116 = vmatprep.subr.mxu0 0.0
    %117 = vmatpush1.msra.mxu0 0.0
    %118 = vmatprep.subr.mxu0 0.0
    %119 = vmatpush1.msra.mxu0 0.0
    %120 = vmatprep.subr.mxu0 0.0
    %121 = vmatpush1.msra.mxu0 0.0
    %122 = vmatprep.subr.mxu0 0.0
    %123 = vmatpush1.msra.mxu0 0.0
    %124 = vmatprep.subr.mxu0 0.0
    %125 = vmatpush1.msra.mxu0 0.0
    %126 = vmatprep.mubr.f32.mxu0 0.0
    %127 = vmatmul.mubr.f32.gmra.mrb[0].mxu0 %v57
    %v128 = vpop.f32.mrb[0].mxu0
    %v129 = vadd.f32 0.0, %v128
    %v130 = vpop.f32.mrb[0].mxu0
    %131 = vmatprep.mubr.f32.mxu0 0.0
    %132 = vmatmul.mubr.f32.gmra.mrb[0].mxu0 %v60
    %v133 = vpop.f32.mrb[0].mxu0
    %v134 = vadd.f32 0.0, %v133
    %v135 = vpop.f32.mrb[0].mxu0
    %136 = vdwg.mxu0
    %v137 = vadd.f32 %v47, %v129
    %v138 = vadd.f32 %v48, %v134
    %vm139 = vcmask 523264
    %140 = vst.msk [vmem:[#allocation2] sm:$0xff] %vm139, %v137
    %141 = vst.msk [vmem:[#allocation2 + $0x8] sm:$0xff] %vm139, %v138
    // Predicated region
    $region22: #{tpu_custom_call.1} parent=1 // pred_check
      %p142 = pneg %p40
    $region23: #{tpu_custom_call.1} parent=1 // pred_check_branch
      %144 = sbr.rel (%p142) target = $region25
    $region24: #{tpu_custom_call.1} parent=1 // pred_region
      %v145 = vld [vmem:[#allocation2] sm:$0xff]
      %v146 = vld [vmem:[#allocation2 + $0x8] sm:$0xff]
      %147 = vst.msk [vmem:[#allocation8] sm:$0xff] %vm139, %v145
      %148 = vst.msk [vmem:[#allocation8 + $0x8] sm:$0xff] %vm139, %v146
    $region25: #{tpu_custom_call.1} parent=1 // pred_fallthru
      _
    // Predicated region
    $region26: #{tpu_custom_call.1} parent=1 // pred_check
      _
    $region27: #{tpu_custom_call.1} parent=1 // pred_check_branch
      %150 = sbr.rel (0) target = $region29
    $region28: #{tpu_custom_call.1} parent=1 // pred_region
      %s152 = ssub.s32 256, 256
      %153 = vsyncadd [#allocation5], %s152
      %s154 = sshll.u32 [#allocation8], 4
      %s155 = int_to_ptr.vmem [resolvable:$true] %s154
      %160 = dma.vmem_to_hbm [thread:$0]  %s155, 256, %s2, [#allocation5], 128, 128, 8
    $region29: #{tpu_custom_call.1} parent=1 // pred_fallthru
      _
    // Predicated region
    $region30: #{tpu_custom_call.1} parent=1 // pred_check
      _
    $region31: #{tpu_custom_call.1} parent=1 // pred_check_branch
      %162 = sbr.rel (0) target = $region33
    $region32: #{tpu_custom_call.1} parent=1 // pred_region
      %163 = dma.done [#allocation5], 256
    $region33: #{tpu_custom_call.1} parent=1 // pred_fallthru
      _
    %164 = vsyncpa [#allocation4], 1
    %165 = vsyncpa [#allocation7], 1
    %166 = vsyncpa [#allocation5], 1

</llo_original>
